<compile_context>
chip_gen: v7x
topology: tpu7x:2x2x1
jax: 0.10.0
libtpu: 0.0.40
codegen_flags: <defaults>
</compile_context>

<pallas_src>
import functools

import jax
import jax.numpy as jnp
from jax import lax
from jax.experimental import pallas as pl
from jax.experimental.pallas import tpu as pltpu


def _round_up(x, m):
    return (x + m - 1) // m * m


def _pick_tiles(n, sublane):
    if n <= 256:
        tq = _round_up(n, sublane)   # single tile covers the whole (padded) batch
    elif n <= 1024:
        tq = 256                     # >= 2 query tiles -> megacore-friendly on v7x
    else:
        tq = 512                     # amortize the nq-fold key re-stream from HBM
    return tq, tq                    # aligned tiles: the diagonal lives at qi == ki


def _vmem_limit_bytes(tq, tk, d, itemsize):
    # double-buffered q and k^T input blocks + f32 logits/exp intermediates + headroom
    need = 2 * (tq * d + d * tk) * itemsize + 4 * tq * tk * 4 + (4 << 20)
    try:
        cap = int(getattr(pltpu.get_tpu_info(), "vmem_capacity_bytes", 64 << 20))
    except Exception:
        cap = 64 << 20               # conservative: v7x physical VMEM per TensorCore
    return int(min(max(need, 32 << 20), cap * 3 // 4))


def _info_nce_kernel(q_ref, kT_ref, out_ref, m_ref, l_ref, diag_ref, *,
                     n_valid, inv_temp, tq, tk, padded, use_fixed_max):
    qi = pl.program_id(0)
    ki = pl.program_id(1)
    nk = pl.num_programs(1)

    # ---- once per query tile: reset the online accumulators.
    @pl.when(ki == 0)
    def _():
        if not use_fixed_max:
            m_ref[...] = jnp.full_like(m_ref, -jnp.inf)
        l_ref[...] = jnp.zeros_like(l_ref)
        diag_ref[...] = jnp.zeros_like(diag_ref)

    # ---- logits tile on the MXU: plain [tq, D] x [D, tk], f32 accumulation.
    #      (q was normalized and scaled by 1/T in the wrapper; k^T was normalized.)
    s = jnp.dot(q_ref[...], kT_ref[...], preferred_element_type=jnp.float32)

    if padded:  # static: cheap (1, tk) column-validity mask (padding only in last key tile).
        col = ki * tk + lax.broadcasted_iota(jnp.int32, (1, tk), 1)
        s = jnp.where(col < n_valid, s, jnp.float32(-1e30))

    # ---- positive-pair logits: diagonal of the aligned (qi == ki) tile, taken from
    #      the same s used for the logsumexp (exact match to the reference).
    @pl.when(ki == qi)
    def _():
        r = lax.broadcasted_iota(jnp.int32, (tq, tk), 0)
        c = lax.broadcasted_iota(jnp.int32, (tq, tk), 1)
        diag_ref[...] = jnp.sum(jnp.where(r == c, s, jnp.float32(0.0)),
                                axis=1, keepdims=True)

    # ---- online logsumexp over key tiles.
    if use_fixed_max:
        # Cosine logits are bounded: |s| <= 1/T, so a fixed max is safe (relative
        # underflow bounded by exp(-2/T)); skips the per-step max reduce + rescale.
        l_ref[...] += jnp.sum(jnp.exp(s - jnp.float32(inv_temp)), axis=1, keepdims=True)
    else:
        m_prev = m_ref[...]
        m_new = jnp.maximum(m_prev, jnp.max(s, axis=1, keepdims=True))
        p = jnp.exp(s - m_new)
        l_ref[...] = jnp.exp(m_prev - m_new) * l_ref[...] + jnp.sum(p, axis=1, keepdims=True)
        m_ref[...] = m_new

    # ---- finalize this query tile: per-row (logsumexp - positive logit).
    @pl.when(ki == nk - 1)
    def _():
        m = jnp.float32(inv_temp) if use_fixed_max else m_ref[...]
        lse = m + jnp.log(l_ref[...])                      # (tq, 1)
        per_row = lse - diag_ref[...]                      # (tq, 1)
        if padded:  # static: zero contributions from padded query rows.
            row = qi * tq + lax.broadcasted_iota(jnp.int32, (tq, 1), 0)
            per_row = jnp.where(row < n_valid, per_row, jnp.float32(0.0))
        out_ref[...] = per_row.reshape(1, tq, 1)


@functools.partial(jax.jit, static_argnames=("temperature", "mxu_dtype"))
def info_nce(query, key, temperature=0.1, mxu_dtype=jnp.bfloat16):
    """InfoNCE loss; query, key: (N, D). Returns scalar f32 (reduction='mean')."""
    assert query.ndim == 2 and query.shape == key.shape
    n, d = query.shape
    inv_temp = float(1.0 / temperature)
    mxu_dtype = jnp.dtype(mxu_dtype)

    # torch.nn.functional.normalize: x / max(||x||, 1e-12) == x * rsqrt(max(ss, 1e-24)).
    eps2 = jnp.float32(1e-24)
    q = query.astype(jnp.float32)
    k = key.astype(jnp.float32)
    qn = q * (lax.rsqrt(jnp.maximum(jnp.sum(q * q, axis=1, keepdims=True), eps2))
              * jnp.float32(inv_temp))                     # 1/temperature folded into q
    kn = k * lax.rsqrt(jnp.maximum(jnp.sum(k * k, axis=1, keepdims=True), eps2))

    sublane = 16 if mxu_dtype == jnp.bfloat16 else 8
    tq, tk = _pick_tiles(n, sublane)
    n_pad = _round_up(n, tq)
    nq = n_pad // tq
    nk = n_pad // tk
    padded = n_pad != n
    if padded:
        pad = ((0, n_pad - n), (0, 0))
        qn = jnp.pad(qn, pad)      # padded rows are exactly zero -> logits exactly 0
        kn = jnp.pad(kn, pad)

    qn = qn.astype(mxu_dtype)      # (n_pad, d)
    knT = kn.T.astype(mxu_dtype)   # (d, n_pad): kernel matmul needs no key transpose

    kernel = functools.partial(
        _info_nce_kernel,
        n_valid=n, inv_temp=inv_temp, tq=tq, tk=tk, padded=padded,
        use_fixed_max=(inv_temp <= 40.0))

    out = pl.pallas_call(
        kernel,
        out_shape=jax.ShapeDtypeStruct((nq, tq, 1), jnp.float32),
        grid_spec=pltpu.PrefetchScalarGridSpec(
            num_scalar_prefetch=0,
            grid=(nq, nk),
            in_specs=[
                pl.BlockSpec((tq, d), lambda qi, ki: (qi, 0)),   # normalized+scaled q tile
                pl.BlockSpec((d, tk), lambda qi, ki: (0, ki)),   # normalized key^T tile
            ],
            out_specs=pl.BlockSpec((1, tq, 1), lambda qi, ki: (qi, 0, 0)),
            scratch_shapes=[
                pltpu.VMEM((tq, 1), jnp.float32),   # running max (online fallback only)
                pltpu.VMEM((tq, 1), jnp.float32),   # running sum(exp)
                pltpu.VMEM((tq, 1), jnp.float32),   # positive (diagonal) logits
            ]),
        compiler_params=pltpu.CompilerParams(
            dimension_semantics=("parallel", "arbitrary"),
            vmem_limit_bytes=_vmem_limit_bytes(tq, tk, d, mxu_dtype.itemsize)),
    )(qn, knT)

    return jnp.sum(out) / jnp.float32(n)


def _info_nce_ref(query, key, temperature=0.1):
    # Pure-JAX reference for sanity checking.
    q = query.astype(jnp.float32)
    k = key.astype(jnp.float32)
    qn = q / jnp.maximum(jnp.linalg.norm(q, axis=1, keepdims=True), 1e-12)
    kn = k / jnp.maximum(jnp.linalg.norm(k, axis=1, keepdims=True), 1e-12)
    logits = (qn @ kn.T) / temperature
    lse = jax.scipy.special.logsumexp(logits, axis=1)
    diag = jnp.diagonal(logits)
    return jnp.mean(lse - diag)


if __name__ == "__main__":
    k0, k1, k2, k3 = jax.random.split(jax.random.PRNGKey(0), 4)

    # --- small shape (single-tile path): batch N=8, feature dim D=32.
    N, D = 8, 32
    query = jax.random.normal(k0, (N, D), dtype=jnp.float32)
    key = jax.random.normal(k1, (N, D), dtype=jnp.float32)
    ref = jax.block_until_ready(_info_nce_ref(query, key, temperature=0.1))

    loss_bf16 = jax.block_until_ready(info_nce(query, key, temperature=0.1))
    loss_f32 = jax.block_until_ready(
        info_nce(query, key, temperature=0.1, mxu_dtype=jnp.float32))
    assert jnp.allclose(loss_bf16, ref, rtol=3e-2, atol=3e-2), (loss_bf16, ref)
    assert jnp.allclose(loss_f32, ref, rtol=1e-3, atol=1e-4), (loss_f32, ref)

    # --- multi-tile + padded path (exercises online LSE, diag alignment, masks).
    N2, D2 = 300, 64
    query2 = jax.random.normal(k2, (N2, D2), dtype=jnp.float32)
    key2 = jax.random.normal(k3, (N2, D2), dtype=jnp.float32)
    ref2 = jax.block_until_ready(_info_nce_ref(query2, key2, temperature=0.1))

    loss2_bf16 = jax.block_until_ready(info_nce(query2, key2, temperature=0.1))
    loss2_f32 = jax.block_until_ready(
        info_nce(query2, key2, temperature=0.1, mxu_dtype=jnp.float32))
    assert jnp.allclose(loss2_bf16, ref2, rtol=3e-2, atol=3e-2), (loss2_bf16, ref2)
    assert jnp.allclose(loss2_f32, ref2, rtol=1e-3, atol=1e-4), (loss2_f32, ref2)

    print("KERNEL_OK")
</pallas_src>

<mosaic_0001>
module attributes {stable_mosaic.version = 11 : i64} {
  func.func @_info_nce_kernel(%arg0: i32, %arg1: i32, %arg2: memref<16x32xbf16, #tpu.memory_space<vmem>>, %arg3: memref<32x16xbf16, #tpu.memory_space<vmem>>, %arg4: memref<1x16x1xf32, #tpu.memory_space<vmem>>, %arg5: memref<16x1xf32, #tpu.memory_space<vmem>>, %arg6: memref<16x1xf32, #tpu.memory_space<vmem>>, %arg7: memref<16x1xf32, #tpu.memory_space<vmem>>) attributes {dimension_semantics = [#tpu.dimension_semantics<parallel>, #tpu.dimension_semantics<arbitrary>], iteration_bounds = array<i64: 1, 1>, scalar_prefetch = 0 : i64, scratch_operands = 3 : i64, tpu.core_type = #tpu.core_type<tc>, window_params = [{transform_indices = @transform_0, window_bounds = array<i64: 16, 32>}, {transform_indices = @transform_1, window_bounds = array<i64: 32, 16>}, {transform_indices = @transform_2, window_bounds = array<i64: 1, 16, 1>}]} {
    %c0_i32 = arith.constant 0 : i32
    %0 = arith.cmpi eq, %arg1, %c0_i32 : i32
    %1 = arith.extui %0 : i1 to i32
    %c0_i32_0 = arith.constant 0 : i32
    %2 = arith.cmpi ne, %1, %c0_i32_0 : i32
    scf.if %2 {
      %cst_14 = arith.constant 0.000000e+00 : f32
      %30 = vector.broadcast %cst_14 : f32 to vector<16x1xf32>
      %c0_15 = arith.constant 0 : index
      %c0_16 = arith.constant 0 : index
      %31 = vector.load %arg6[%c0_15, %c0_16] : memref<16x1xf32, #tpu.memory_space<vmem>>, vector<16x1xf32>
      tpu.vector_store %arg6[%c0_15, %c0_16], %30 {strides = array<i32>} : memref<16x1xf32, #tpu.memory_space<vmem>>, vector<16x1xf32>,
      %cst_17 = arith.constant 0.000000e+00 : f32
      %32 = vector.broadcast %cst_17 : f32 to vector<16x1xf32>
      %c0_18 = arith.constant 0 : index
      %c0_19 = arith.constant 0 : index
      %33 = vector.load %arg7[%c0_18, %c0_19] : memref<16x1xf32, #tpu.memory_space<vmem>>, vector<16x1xf32>
      tpu.vector_store %arg7[%c0_18, %c0_19], %32 {strides = array<i32>} : memref<16x1xf32, #tpu.memory_space<vmem>>, vector<16x1xf32>,
    } else {
    }
    %c0 = arith.constant 0 : index
    %c0_1 = arith.constant 0 : index
    %3 = vector.load %arg2[%c0, %c0_1] : memref<16x32xbf16, #tpu.memory_space<vmem>>, vector<16x32xbf16>
    %c0_2 = arith.constant 0 : index
    %c0_3 = arith.constant 0 : index
    %4 = vector.load %arg3[%c0_2, %c0_3] : memref<32x16xbf16, #tpu.memory_space<vmem>>, vector<32x16xbf16>
    %cst = arith.constant dense<0.000000e+00> : vector<16x16xf32>
    %5 = tpu.matmul %3, %4, %cst {dimension_numbers = #tpu.dot_dimension_numbers<[1], [0], [0], [1], [0, 0, 1, 1], [], []>} : vector<16x32xbf16>, vector<32x16xbf16>, vector<16x16xf32> -> vector<16x16xf32>
    %c16_i32 = arith.constant 16 : i32
    %6 = arith.muli %arg1, %c16_i32 : i32
    %7 = tpu.iota {dimensions = array<i32: 1>} : vector<1x16xi32>
    %8 = vector.broadcast %6 : i32 to vector<1x16xi32>
    %9 = arith.addi %8, %7 : vector<1x16xi32>
    %c8_i32 = arith.constant 8 : i32
    %10 = vector.broadcast %c8_i32 : i32 to vector<1x16xi32>
    %11 = arith.cmpi slt, %9, %10 : vector<1x16xi32>
    %cst_4 = arith.constant -1.000000e+30 : f32
    %12 = vector.shape_cast %11 : vector<1x16xi1> to vector<1x16xi1>
    %13 = vector.broadcast %12 : vector<1x16xi1> to vector<16x16xi1>
    %14 = vector.broadcast %cst_4 : f32 to vector<16x16xf32>
    %15 = arith.select %13, %5, %14 : vector<16x16xi1>, vector<16x16xf32>
    %16 = arith.cmpi eq, %arg1, %arg0 : i32
    %17 = arith.extui %16 : i1 to i32
    %c0_i32_5 = arith.constant 0 : i32
    %18 = arith.cmpi ne, %17, %c0_i32_5 : i32
    scf.if %18 {
      %30 = tpu.iota {dimensions = array<i32: 0>} : vector<16x16xi32>
      %31 = tpu.iota {dimensions = array<i32: 1>} : vector<16x16xi32>
      %32 = arith.cmpi eq, %30, %31 : vector<16x16xi32>
      %cst_14 = arith.constant 0.000000e+00 : f32
      %33 = vector.broadcast %cst_14 : f32 to vector<16x16xf32>
      %34 = arith.select %32, %15, %33 : vector<16x16xi1>, vector<16x16xf32>
      %cst_15 = arith.constant dense<0.000000e+00> : vector<16xf32>
      %35 = vector.multi_reduction <add>, %34, %cst_15 [1] : vector<16x16xf32> to vector<16xf32>
      %36 = vector.shape_cast %35 : vector<16xf32> to vector<16x1xf32>
      %c0_16 = arith.constant 0 : index
      %c0_17 = arith.constant 0 : index
      %37 = vector.load %arg7[%c0_16, %c0_17] : memref<16x1xf32, #tpu.memory_space<vmem>>, vector<16x1xf32>
      tpu.vector_store %arg7[%c0_16, %c0_17], %36 {strides = array<i32>} : memref<16x1xf32, #tpu.memory_space<vmem>>, vector<16x1xf32>,
    } else {
    }
    %c0_6 = arith.constant 0 : index
    %c0_7 = arith.constant 0 : index
    %19 = vector.load %arg6[%c0_6, %c0_7] : memref<16x1xf32, #tpu.memory_space<vmem>>, vector<16x1xf32>
    %cst_8 = arith.constant 1.000000e+01 : f32
    %20 = vector.broadcast %cst_8 : f32 to vector<16x16xf32>
    %21 = arith.subf %15, %20 : vector<16x16xf32>
    %22 = math.exp %21 : vector<16x16xf32>
    %cst_9 = arith.constant dense<0.000000e+00> : vector<16xf32>
    %23 = vector.multi_reduction <add>, %22, %cst_9 [1] : vector<16x16xf32> to vector<16xf32>
    %24 = vector.shape_cast %23 : vector<16xf32> to vector<16x1xf32>
    %25 = arith.addf %19, %24 : vector<16x1xf32>
    %c0_10 = arith.constant 0 : index
    %c0_11 = arith.constant 0 : index
    %26 = vector.load %arg6[%c0_10, %c0_11] : memref<16x1xf32, #tpu.memory_space<vmem>>, vector<16x1xf32>
    tpu.vector_store %arg6[%c0_10, %c0_11], %25 {strides = array<i32>} : memref<16x1xf32, #tpu.memory_space<vmem>>, vector<16x1xf32>,
    %c0_i32_12 = arith.constant 0 : i32
    %27 = arith.cmpi eq, %arg1, %c0_i32_12 : i32
    %28 = arith.extui %27 : i1 to i32
    %c0_i32_13 = arith.constant 0 : i32
    %29 = arith.cmpi ne, %28, %c0_i32_13 : i32
    scf.if %29 {
      %c0_14 = arith.constant 0 : index
      %c0_15 = arith.constant 0 : index
      %30 = vector.load %arg6[%c0_14, %c0_15] : memref<16x1xf32, #tpu.memory_space<vmem>>, vector<16x1xf32>
      %31 = math.log %30 : vector<16x1xf32>
      %cst_16 = arith.constant 1.000000e+01 : f32
      %32 = vector.broadcast %cst_16 : f32 to vector<16x1xf32>
      %33 = arith.addf %32, %31 : vector<16x1xf32>
      %c0_17 = arith.constant 0 : index
      %c0_18 = arith.constant 0 : index
      %34 = vector.load %arg7[%c0_17, %c0_18] : memref<16x1xf32, #tpu.memory_space<vmem>>, vector<16x1xf32>
      %35 = arith.subf %33, %34 : vector<16x1xf32>
      %c16_i32_19 = arith.constant 16 : i32
      %36 = arith.muli %arg0, %c16_i32_19 : i32
      %37 = tpu.iota {dimensions = array<i32: 0>} : vector<16x1xi32>
      %38 = vector.broadcast %36 : i32 to vector<16x1xi32>
      %39 = arith.addi %38, %37 : vector<16x1xi32>
      %c8_i32_20 = arith.constant 8 : i32
      %40 = vector.broadcast %c8_i32_20 : i32 to vector<16x1xi32>
      %41 = arith.cmpi slt, %39, %40 : vector<16x1xi32>
      %cst_21 = arith.constant 0.000000e+00 : f32
      %42 = vector.broadcast %cst_21 : f32 to vector<16x1xf32>
      %43 = arith.select %41, %35, %42 : vector<16x1xi1>, vector<16x1xf32>
      %44 = vector.shape_cast %43 : vector<16x1xf32> to vector<1x16x1xf32>
      %c0_22 = arith.constant 0 : index
      %c0_23 = arith.constant 0 : index
      %c0_24 = arith.constant 0 : index
      %45 = vector.load %arg4[%c0_22, %c0_23, %c0_24] : memref<1x16x1xf32, #tpu.memory_space<vmem>>, vector<1x16x1xf32>
      tpu.vector_store %arg4[%c0_22, %c0_23, %c0_24], %44 {strides = array<i32>} : memref<1x16x1xf32, #tpu.memory_space<vmem>>, vector<1x16x1xf32>,
    } else {
    }
    return
  }
  func.func @transform_0(%arg0: i32, %arg1: i32) -> (i32, i32) {
    %c0_i32 = arith.constant 0 : i32
    %c0_i32_0 = arith.constant 0 : i32
    return %arg0, %c0_i32 : i32, i32
  }
  func.func @transform_1(%arg0: i32, %arg1: i32) -> (i32, i32) {
    %c0_i32 = arith.constant 0 : i32
    %c0_i32_0 = arith.constant 0 : i32
    return %c0_i32, %arg1 : i32, i32
  }
  func.func @transform_2(%arg0: i32, %arg1: i32) -> (i32, i32, i32) {
    %c0_i32 = arith.constant 0 : i32
    %c0_i32_0 = arith.constant 0 : i32
    %c0_i32_1 = arith.constant 0 : i32
    return %arg0, %c0_i32, %c0_i32_0 : i32, i32, i32
  }
}

</mosaic_0001>

<llo_original>
// kernel: info_nce.1
$region0: #{info_nce.1}
  #allocation0 [shape = 'u32[]', space=smem, size = 0x4, offset = 0x4, fixed_abs, tag = 'smem constant byte address 0x4 - core index']
  #allocation1 [shape = 'u32[144,128]{1,0:T(1,128)}', space=vmem, size = 0x12000, scoped, tag = 'internal scratch']
  #allocation2 [shape = 'f32[16,1]{1,0:T(8,128)}', space=vmem, size = 0x2000, scoped, tag = 'scratch operand']
  #allocation3 [shape = 'f32[16,1]{1,0:T(8,128)}', space=vmem, size = 0x2000, scoped, tag = 'scratch operand']
  #allocation4 [shape = 'f32[16,1]{1,0:T(8,128)}', space=vmem, size = 0x2000, scoped, tag = 'scratch operand']
  %s0 = inlined_call_operand.vmem [shape: bf16[16,32], index: 0, kind: input, shape index: {}]
  %s1 = inlined_call_operand.vmem [shape: bf16[32,16], index: 1, kind: input, shape index: {}]
  %s2 = inlined_call_operand.vmem [shape: f32[1,16,1], index: 2, kind: output, shape index: {}]
  %s3 = sld [smem:[#allocation0]]
  $region30: #{info_nce.1} parent=0
    _
  %s5 = ssub.s32 1, %s3
  %s6 = scalar_select 0, %s5, %s3
  // Predicated region
  $region2: #{info_nce.1} parent=0 // pred_check
    _
  $region3: #{info_nce.1} parent=0 // pred_check_branch
    %8 = sbr.rel (0) target = $region5
  $region4: #{info_nce.1} parent=0 // pred_region
    _
  $region5: #{info_nce.1} parent=0 // pred_fallthru
    _
  // Predicated region
  $region6: #{info_nce.1} parent=0 // pred_check
    _
  $region7: #{info_nce.1} parent=0 // pred_check_branch
    %10 = sbr.rel (0) target = $region9
  $region8: #{info_nce.1} parent=0 // pred_region
    _
  $region9: #{info_nce.1} parent=0 // pred_fallthru
    _
  %p12 = scmp.eq.s32.totalorder 0, 0
  // Predicated region
  $region10: #{info_nce.1} parent=0 // pred_check
    %p13 = pneg %p12
  $region11: #{info_nce.1} parent=0 // pred_check_branch
    %15 = sbr.rel (%p13) target = $region13
  $region12: #{info_nce.1} parent=0 // pred_region
    %vm16 = vcmask 7168
    %17 = vst.msk [vmem:[#allocation3] sm:$0xff] %vm16, 0.0
    %18 = vst.msk [vmem:[#allocation3 + $0x8] sm:$0xff] %vm16, 0.0
    %19 = vst.msk [vmem:[#allocation4] sm:$0xff] %vm16, 0.0
    %20 = vst.msk [vmem:[#allocation4 + $0x8] sm:$0xff] %vm16, 0.0
  $region13: #{info_nce.1} parent=0 // pred_fallthru
    _
  %v21 = vld [vmem:[%s0] sm:$0xf]
  %v22 = vld [vmem:[%s0 + $0x4] sm:$0xf]
  %v23 = vld [vmem:[%s1] sm:$0xf]
  %v24 = vld [vmem:[%s1 + $0x4] sm:$0xf]
  %v25 = vld [vmem:[%s1 + $0x8] sm:$0xf]
  %v26 = vld [vmem:[%s1 + $0xc] sm:$0xf]
  %v29 = vunpack.c.l.b16 %v21
  %v30 = vunpack.c.l.b16 %v22
  %v31 = vpack.c.b16 %v30, %v29
  %v36 = vunpack.c.l.b16 %v23
  %v37 = vunpack.c.l.b16 %v24
  %v38 = vunpack.c.l.b16 %v25
  %v39 = vunpack.c.l.b16 %v26
  %v40 = vpack.c.b16 %v37, %v36
  %v41 = vpack.c.b16 %v39, %v38
  %vm44 = vcmask 261120
  %v46 = vsel %vm44, %v31, 0
  %48 = vmatprep.subr.bf16.mxu0 0
  %49 = vmatpush1.bf16.msra.mxu0 %v40
  %50 = vmatprep.subr.bf16.mxu0 0
  %51 = vmatpush1.bf16.msra.mxu0 %v41
  %52 = vmatprep.subr.bf16.mxu0 0
  %53 = vmatpush1.bf16.msra.mxu0 0
  %54 = vmatprep.subr.bf16.mxu0 0
  %55 = vmatpush1.bf16.msra.mxu0 0
  %56 = vmatprep.subr.bf16.mxu0 0
  %57 = vmatpush1.bf16.msra.mxu0 0
  %58 = vmatprep.subr.bf16.mxu0 0
  %59 = vmatpush1.bf16.msra.mxu0 0
  %60 = vmatprep.subr.bf16.mxu0 0
  %61 = vmatpush1.bf16.msra.mxu0 0
  %62 = vmatprep.subr.bf16.mxu0 0
  %63 = vmatpush1.bf16.msra.mxu0 0
  %64 = vmatprep.subr.bf16.mxu0 0
  %65 = vmatpush1.bf16.msra.mxu0 0
  %66 = vmatprep.subr.bf16.mxu0 0
  %67 = vmatpush1.bf16.msra.mxu0 0
  %68 = vmatprep.subr.bf16.mxu0 0
  %69 = vmatpush1.bf16.msra.mxu0 0
  %70 = vmatprep.subr.bf16.mxu0 0
  %71 = vmatpush1.bf16.msra.mxu0 0
  %72 = vmatprep.subr.bf16.mxu0 0
  %73 = vmatpush1.bf16.msra.mxu0 0
  %74 = vmatprep.subr.bf16.mxu0 0
  %75 = vmatpush1.bf16.msra.mxu0 0
  %76 = vmatprep.subr.bf16.mxu0 0
  %77 = vmatpush1.bf16.msra.mxu0 0
  %78 = vmatprep.subr.bf16.mxu0 0
  %79 = vmatpush1.bf16.msra.mxu0 0
  %80 = vmatprep.mubr.bf16.mxu0 0
  %81 = vmatmul.mubr.bf16.gmra.mrb[0].mxu0 %v46
  %v82 = vpop.f32.mrb[0].mxu0
  %v83 = vadd.f32 0.0, %v82
  %v84 = vpop.f32.mrb[0].mxu0
  %v85 = vpop.f32.mrb[0].mxu0
  %v86 = vadd.f32 0.0, %v85
  %v87 = vpop.f32.mrb[0].mxu0
  %88 = vdwg.mxu0
  %s89 = smul.u32 0, 16
  %v90 = vlaneseq
  %v91 = vand.u32 %v90, 127
  %v92 = vstv %s89
  %v93 = vadd.s32 %v92, %v91
  %vm94 = vcmp.lt.s32.totalorder %v93, 8
  %v95 = vsel %vm94, 1, 0
  %vm96 = vcmp.eq.s32.totalorder %v95, 1
  %v97 = vsel %vm96, %v83, -1e+30
  %v98 = vsel %vm96, %v86, -1e+30
  %p99 = scmp.eq.s32.totalorder 0, 0
  // Predicated region
  $region14: #{info_nce.1} parent=0 // pred_check
    %p100 = pneg %p99
  $region15: #{info_nce.1} parent=0 // pred_check_branch
    %102 = sbr.rel (%p100) target = $region17
  $region16: #{info_nce.1} parent=0 // pred_region
    %v103 = vlaneseq
    %v104 = vshrl.u32 %v103, 7
    %v105 = vadd.s32 %v104, 8
    %vm106 = vcmp.eq.s32.totalorder %v104, %v91
    %vm107 = vcmp.eq.s32.totalorder %v105, %v91
    %v108 = vsel %vm106, %v97, 0.0
    %v109 = vsel %vm107, %v98, 0.0
    %vm110 = vcmask 130048
    %v111 = vsel %vm110, %v108, 0.0
    %112 = vadd.xlane.f32.xlu0 %v111
    %v113 = vpop.xlane.xlu0 %112
    %v114 = vsel %vm110, %v109, 0.0
    %115 = vadd.xlane.f32.xlu0 %v114
    %v116 = vpop.xlane.xlu0 %115
    %vm117 = vcmask 7168
    %118 = vst.msk [vmem:[#allocation4] sm:$0xff] %vm117, %v113
    %119 = vst.msk [vmem:[#allocation4 + $0x8] sm:$0xff] %vm117, %v116
  $region17: #{info_nce.1} parent=0 // pred_fallthru
    _
  %v120 = vld [vmem:[#allocation3] sm:$0xff]
  %v121 = vld [vmem:[#allocation3 + $0x8] sm:$0xff]
  %v122 = vsub.f32 %v97, 10.0
  %v123 = vsub.f32 %v98, 10.0
  %v124 = vmul.f32 %v122, 1.442695
  %v125 = vpow.pop %v124
  %v126 = vmul.f32 %v123, 1.442695
  %v127 = vpow.pop %v126
  %vm128 = vcmask 130048
  %v129 = vsel %vm128, %v125, 0.0
  %130 = vadd.xlane.f32.xlu0 %v129
  %v131 = vpop.xlane.xlu0 %130
  %v132 = vsel %vm128, %v127, 0.0
  %133 = vadd.xlane.f32.xlu0 %v132
  %v134 = vpop.xlane.xlu0 %133
  %v135 = vadd.f32 %v120, %v131
  %v136 = vadd.f32 %v121, %v134
  %vm137 = vcmask 7168
  %138 = vst.msk [vmem:[#allocation3] sm:$0xff] %vm137, %v135
  %139 = vst.msk [vmem:[#allocation3 + $0x8] sm:$0xff] %vm137, %v136
  // Predicated region
  $region18: #{info_nce.1} parent=0 // pred_check
    %p140 = pneg %p12
  $region19: #{info_nce.1} parent=0 // pred_check_branch
    %142 = sbr.rel (%p140) target = $region21
  $region20: #{info_nce.1} parent=0 // pred_region
    %v143 = vld [vmem:[#allocation3] sm:$0xff]
    %v144 = vld [vmem:[#allocation3 + $0x8] sm:$0xff]
    %v145 = vlog2.pop %v143
    %v146 = vmul.f32 %v145, 0.6931472
    %v147 = vlog2.pop %v144
    %v148 = vmul.f32 %v147, 0.6931472
    %v149 = vadd.f32 %v146, 10.0
    %v150 = vadd.f32 %v148, 10.0
    %v151 = vld [vmem:[#allocation4] sm:$0xff]
    %v152 = vld [vmem:[#allocation4 + $0x8] sm:$0xff]
    %v153 = vsub.f32 %v149, %v151
    %v154 = vsub.f32 %v150, %v152
    %s155 = smul.u32 0, 16
    %v156 = vlaneseq
    %v157 = vshrl.u32 %v156, 7
    %v158 = vadd.s32 %v157, 8
    %v159 = vstv %s155
    %v160 = vadd.s32 %v159, %v157
    %v161 = vadd.s32 %v159, %v158
    %vm162 = vcmp.lt.s32.totalorder %v160, 8
    %vm163 = vcmp.lt.s32.totalorder %v161, 8
    %v164 = vsel %vm162, %v153, 0.0
    %v165 = vsel %vm163, %v154, 0.0
    %166 = vst.msk [vmem:[%s2] sm:$0xff] %vm137, %v164
    %167 = vst.msk [vmem:[%s2 + $0x8] sm:$0xff] %vm137, %v165
  $region21: #{info_nce.1} parent=0 // pred_fallthru
    _
  // Predicated region
  $region22: #{info_nce.1} parent=0 // pred_check
    _
  $region23: #{info_nce.1} parent=0 // pred_check_branch
    %169 = sbr.rel (0) target = $region25
  $region24: #{info_nce.1} parent=0 // pred_region
    _
  $region25: #{info_nce.1} parent=0 // pred_fallthru
    _
  // Predicated region
  $region26: #{info_nce.1} parent=0 // pred_check
    _
  $region27: #{info_nce.1} parent=0 // pred_check_branch
    %171 = sbr.rel (0) target = $region29
  $region28: #{info_nce.1} parent=0 // pred_region
    _
  $region29: #{info_nce.1} parent=0 // pred_fallthru
    _

</llo_original>
